<compile_context>
chip_gen: v7x
topology: tpu7x:2x2x1
jax: 0.10.0
libtpu: 0.0.40
codegen_flags: <defaults>
</compile_context>

<pallas_src>
from functools import partial

import jax
import jax.numpy as jnp
from jax.experimental import pallas as pl
from jax.experimental.pallas import tpu as pltpu

NEIGHBOR_NUM = 4
POOLING_RATE = 4

_LANE = 128


def _round_up(x, m):
    return ((x + m - 1) // m) * m


def _tpu_vmem_capacity():
    """Per-TensorCore VMEM capacity in bytes (fallback: v7x's 64 MiB, the smallest)."""
    try:
        cap = getattr(pltpu.get_tpu_info(), "vmem_capacity_bytes", None)
        if cap:
            return int(cap)
    except Exception:
        pass
    return 64 * 1024 * 1024


def _vmem_estimate(tm, v, cp, neighbor_num, resident_bufs):
    # Live (TM, V) f32 temporaries: dist + ~2 compare/where scratch per round
    # + the neighbor_num one-hots kept alive for the stacked gather + the
    # stacked (n*TM, V) copy itself.
    row_temps = (2 * neighbor_num + 3) * tm * v * 4
    resident = resident_bufs * (v * cp * 4 + 4 * v * 4)            # feats + keys + quad
    io = 2 * (tm * 3 * 4 + tm * cp * 4 + tm * 4)                   # q / out / idx blocks
    gathered = neighbor_num * tm * cp * 4
    return row_temps + resident + io + gathered


def _choose_row_tile(bs, rows, v, cp, neighbor_num, resident_bufs, budget, multi_core):
    """Largest row tile (multiple of 128 dividing `rows`, or `rows`) within budget."""
    if rows % _LANE != 0:
        # irregular sampled-row counts: single tile (block dims == full array dims)
        return rows
    # Only carve bs==1 into >=2 row tiles when there is a second TensorCore to feed
    # (v7x); on single-core v5e/v6e the grid is a serial loop and splitting just
    # adds per-step overhead and MXU weight reloads.
    want_split = multi_core and bs == 1 and rows >= 2 * _LANE
    if (_vmem_estimate(rows, v, cp, neighbor_num, resident_bufs) <= budget
            and not want_split):
        return rows
    cands = [m for m in range(_LANE, rows + 1, _LANE)
             if rows % m == 0
             and _vmem_estimate(m, v, cp, neighbor_num, resident_bufs) <= budget]
    if want_split:
        cands = [m for m in cands if m < rows] or cands
    return max(cands) if cands else _LANE


def _pool_kernel(idx_ref, q_ref, vt_ref, quad_ref, f_ref, o_ref, *, neighbor_num):
    # idx_ref : (TM, 1)   int32  original vertex index of each sampled query row
    # q_ref   : (1, TM, 3)       queries, pre-scaled by -2
    # vt_ref  : (1, 3, V)        all vertices, lane-major          (resident)
    # quad_ref: (1, 1, V)        |v_j|^2 row                        (resident)
    # f_ref   : (1, V, Cp)       feature map, lane-dense padded     (resident)
    # o_ref   : (1, TM, Cp)      pooled neighbor features for this row tile
    q = q_ref[0].astype(jnp.float32)             # (TM, 3)  (= -2 * vertices_pool)
    vt = vt_ref[0].astype(jnp.float32)           # (3, V)
    quad_row = quad_ref[0]                       # (1, V)
    feats = f_ref[0]                             # (V, Cp)

    tm = q.shape[0]
    v = vt.shape[1]
    cp = feats.shape[1]

    # dist[i, j] = -2 <q_i, v_j> + |v_j|^2 ; the row-constant |q_i|^2 term is
    # dropped (does not change per-row argmin).
    inner = jax.lax.dot_general(q, vt, (((1,), (0,)), ((), ())),
                                preferred_element_type=jnp.float32)     # (TM, V)
    dist = inner + quad_row                                             # (TM, V)

    col = jax.lax.broadcasted_iota(jnp.int32, (1, v), 1)                # (1, V)
    self_col = idx_ref[...]                                             # (TM, 1)
    # Exclude self once up front instead of running an extra "drop the first
    # pick" round (differs from torch.topk(k+1)[...,1:] only for exactly
    # coincident points).
    dist = jnp.where(col == self_col, jnp.inf, dist)

    # --- selection: neighbor_num rounds of masked min, lowest-index ties ---
    onehots = []
    for k in range(neighbor_num):
        min_val = jnp.min(dist, axis=-1, keepdims=True)                 # (TM, 1)
        sel = jnp.min(jnp.where(dist == min_val, col, v),
                      axis=-1, keepdims=True)                           # (TM, 1)
        onehot = col == sel                                             # (TM, V)
        onehots.append(onehot)
        if k + 1 < neighbor_num:
            dist = jnp.where(onehot, jnp.inf, dist)

    # --- gather: one stacked matmul streams every round's selectors past the
    #     resident feats weight tile (one MXU weight load, not neighbor_num) ---
    if neighbor_num > 1 and tm % 8 == 0:
        sel_mat = jnp.concatenate([oh.astype(feats.dtype) for oh in onehots],
                                  axis=0)                               # (n*TM, V)
        gathered = jax.lax.dot_general(sel_mat, feats, (((1,), (0,)), ((), ())),
                                       preferred_element_type=jnp.float32)
        pooled = jnp.max(gathered.reshape(neighbor_num, tm, cp), axis=0)
    else:
        # sublane-unaligned row tile: keep layout-safe per-round gathers
        pooled = None
        for oh in onehots:
            g = jax.lax.dot_general(oh.astype(feats.dtype), feats,
                                    (((1,), (0,)), ((), ())),
                                    preferred_element_type=jnp.float32)
            pooled = g if pooled is None else jnp.maximum(pooled, g)

    o_ref[0] = pooled.astype(o_ref.dtype)


def pool_layer(vertices, feature_map, *, pooling_rate=POOLING_RATE,
               neighbor_num=NEIGHBOR_NUM, perm_key=None):
    """Pallas version of Pool_layer.forward.

    vertices:    (bs, V, 3)  float32
    feature_map: (bs, V, C)  float32
    returns (vertices_pool (bs, V//pooling_rate, 3),
             feature_map_pool (bs, V//pooling_rate, C))
    """
    bs, v, _ = vertices.shape
    c = feature_map.shape[2]
    if neighbor_num >= v:
        raise ValueError(f"neighbor_num={neighbor_num} must be < vertice_num={v}")

    pool_num = int(v / pooling_rate)

    # Subsample BEFORE the kernel: only the surviving pool_num rows are processed.
    # TODO(synk): torch.randperm has no in-kernel equivalent; deterministic
    # jax.random.permutation is used here as the subsampling glue.
    if perm_key is None:
        perm_key = jax.random.PRNGKey(0)
    sample_idx = jax.random.permutation(perm_key, v)[:pool_num].astype(jnp.int32)

    vertices_pool = vertices[:, sample_idx, :]                      # (bs, P, 3)

    # Hoisted distance prep: queries pre-scaled by -2 (exact power-of-two scale),
    # lane-major keys, and the |v_j|^2 row computed once.
    q_scaled = (-2.0) * vertices_pool                               # (bs, P, 3)
    verts_t = jnp.transpose(vertices, (0, 2, 1))                    # (bs, 3, V)
    quad_row = jnp.sum(vertices * vertices, axis=-1)[:, None, :]    # (bs, 1, V)

    # Lane-dense feature/output layout: pad C up to a multiple of 128 so the
    # gather matmul N dim and the output stores are full tiles.
    cp = max(_LANE, _round_up(c, _LANE))
    feats = feature_map if cp == c else jnp.pad(
        feature_map, ((0, 0), (0, 0), (0, cp - c)))

    idx_col = sample_idx.reshape(pool_num, 1)                       # (P, 1) int32

    # Generation-aware sizing (v5e/v6e: 128 MiB per core, v7x: 64 MiB + 2 TCs).
    cap = _tpu_vmem_capacity()
    budget = int(0.70 * cap)
    multi_core = cap < 96 * 1024 * 1024     # proxy: only v7x has <96 MiB per TC
    resident_bytes = v * cp * 4 + 4 * v * 4
    # Single-buffer the resident blocks only when double-buffering them would
    # consume more than half the budget (they are only re-fetched per batch).
    resident_bufs = 1 if (4 * resident_bytes > budget) else 2
    tm = _choose_row_tile(bs, pool_num, v, cp, neighbor_num, resident_bufs,
                          budget, multi_core)
    n_row_tiles = pool_num // tm
    est = _vmem_estimate(tm, v, cp, neighbor_num, resident_bufs)
    vmem_limit = int(min(0.85 * cap, max(est + (4 << 20), 32 << 20)))

    resident_kwargs = ({"pipeline_mode": pl.Buffered(1)}
                       if resident_bufs == 1 else {})

    pooled = pl.pallas_call(
        partial(_pool_kernel, neighbor_num=neighbor_num),
        out_shape=jax.ShapeDtypeStruct((bs, pool_num, cp), feature_map.dtype),
        grid_spec=pltpu.PrefetchScalarGridSpec(
            num_scalar_prefetch=0,
            grid=(bs, n_row_tiles),
            in_specs=[
                pl.BlockSpec((tm, 1), lambda b, r: (r, 0)),               # row indices
                pl.BlockSpec((1, tm, 3), lambda b, r: (b, r, 0)),         # queries
                pl.BlockSpec((1, 3, v), lambda b, r: (b, 0, 0),
                             **resident_kwargs),                          # keys (resident)
                pl.BlockSpec((1, 1, v), lambda b, r: (b, 0, 0),
                             **resident_kwargs),                          # |v|^2 (resident)
                pl.BlockSpec((1, v, cp), lambda b, r: (b, 0, 0),
                             **resident_kwargs),                          # feats (resident)
            ],
            out_specs=pl.BlockSpec((1, tm, cp), lambda b, r: (b, r, 0)),
        ),
        compiler_params=pltpu.CompilerParams(
            dimension_semantics=("parallel", "parallel"),
            vmem_limit_bytes=vmem_limit),
    )(idx_col, q_scaled, verts_t, quad_row, feats)

    feature_map_pool = pooled[:, :, :c]
    return vertices_pool, feature_map_pool


def _reference_pooled(vertices, feature_map, neighbor_num):
    """Pure-JAX reference for the neighbor max-pool (pre-subsampling).

    Equivalent to torch.topk(dist, k+1, largest=False)[..., 1:] neighbor
    selection for inputs without exactly coincident vertices (self is
    excluded explicitly, and the row-constant distance term is dropped,
    neither of which changes the selected neighbor set for generic inputs).
    """
    bs, v, _ = vertices.shape
    inner = jnp.einsum('bvd,bwd->bvw', vertices, vertices)
    quad = jnp.sum(vertices ** 2, axis=2)
    dist = -2.0 * inner + quad[:, None, :]
    dist = jnp.where(jnp.eye(v, dtype=bool)[None], jnp.inf, dist)
    nbr = jnp.argsort(dist, axis=-1)[:, :, :neighbor_num]            # (bs, V, n)

    def gather_one(fm, idx):          # fm (V, C), idx (V, n)
        return fm[idx]                # (V, n, C)

    nbr_feat = jax.vmap(gather_one)(feature_map, nbr)                # (bs, V, n, C)
    return nbr_feat.max(axis=2)                                      # (bs, V, C)


if __name__ == "__main__":
    key = jax.random.PRNGKey(0)
    k_v, k_f, k_perm = jax.random.split(key, 3)

    bs, V, C = 2, 64, 32
    vertices = jax.random.normal(k_v, (bs, V, 3), dtype=jnp.float32)
    feature_map = jax.random.normal(k_f, (bs, V, C), dtype=jnp.float32)

    v_pool, f_pool = pool_layer(vertices, feature_map, perm_key=k_perm)
    jax.block_until_ready((v_pool, f_pool))

    assert v_pool.shape == (bs, V // POOLING_RATE, 3)
    assert f_pool.shape == (bs, V // POOLING_RATE, C)

    # correctness check against a pure-JAX reference (same subsampling indices)
    pooled_ref = _reference_pooled(vertices, feature_map, NEIGHBOR_NUM)
    sample_idx = jax.random.permutation(k_perm, V)[:V // POOLING_RATE]
    f_pool_ref = pooled_ref[:, sample_idx, :]
    v_pool_ref = vertices[:, sample_idx, :]
    assert jnp.allclose(v_pool, v_pool_ref)
    assert jnp.allclose(f_pool, f_pool_ref, atol=1e-5, rtol=1e-5)

    print("KERNEL_OK")
</pallas_src>

<mosaic_0001>
module attributes {stable_mosaic.version = 11 : i64} {
  func.func @_pool_kernel(%arg0: i32, %arg1: i32, %arg2: memref<16x1xi32, #tpu.memory_space<vmem>>, %arg3: memref<1x16x3xf32, #tpu.memory_space<vmem>>, %arg4: memref<1x3x64xf32, #tpu.memory_space<vmem>>, %arg5: memref<1x1x64xf32, #tpu.memory_space<vmem>>, %arg6: memref<1x64x128xf32, #tpu.memory_space<vmem>>, %arg7: memref<1x16x128xf32, #tpu.memory_space<vmem>>) attributes {dimension_semantics = [#tpu.dimension_semantics<parallel>, #tpu.dimension_semantics<parallel>], iteration_bounds = array<i64: 2, 1>, scalar_prefetch = 0 : i64, scratch_operands = 0 : i64, tpu.core_type = #tpu.core_type<tc>, window_params = [{transform_indices = @transform_0, window_bounds = array<i64: 16, 1>}, {transform_indices = @transform_1, window_bounds = array<i64: 1, 16, 3>}, {transform_indices = @transform_2, window_bounds = array<i64: 1, 3, 64>}, {transform_indices = @transform_3, window_bounds = array<i64: 1, 1, 64>}, {transform_indices = @transform_4, window_bounds = array<i64: 1, 64, 128>}, {transform_indices = @transform_5, window_bounds = array<i64: 1, 16, 128>}]} {
    %c0 = arith.constant 0 : index
    %c0_0 = arith.constant 0 : index
    %c0_1 = arith.constant 0 : index
    %0 = vector.load %arg3[%c0, %c0_0, %c0_1] : memref<1x16x3xf32, #tpu.memory_space<vmem>>, vector<1x16x3xf32>
    %1 = vector.shape_cast %0 : vector<1x16x3xf32> to vector<16x3xf32>
    %c0_2 = arith.constant 0 : index
    %c0_3 = arith.constant 0 : index
    %c0_4 = arith.constant 0 : index
    %2 = vector.load %arg4[%c0_2, %c0_3, %c0_4] : memref<1x3x64xf32, #tpu.memory_space<vmem>>, vector<1x3x64xf32>
    %3 = vector.shape_cast %2 : vector<1x3x64xf32> to vector<3x64xf32>
    %c0_5 = arith.constant 0 : index
    %c0_6 = arith.constant 0 : index
    %c0_7 = arith.constant 0 : index
    %4 = vector.load %arg5[%c0_5, %c0_6, %c0_7] : memref<1x1x64xf32, #tpu.memory_space<vmem>>, vector<1x1x64xf32>
    %5 = vector.shape_cast %4 : vector<1x1x64xf32> to vector<1x64xf32>
    %c0_8 = arith.constant 0 : index
    %c0_9 = arith.constant 0 : index
    %c0_10 = arith.constant 0 : index
    %6 = vector.load %arg6[%c0_8, %c0_9, %c0_10] : memref<1x64x128xf32, #tpu.memory_space<vmem>>, vector<1x64x128xf32>
    %7 = vector.shape_cast %6 : vector<1x64x128xf32> to vector<64x128xf32>
    %cst = arith.constant dense<0.000000e+00> : vector<16x64xf32>
    %8 = tpu.matmul %1, %3, %cst {dimension_numbers = #tpu.dot_dimension_numbers<[1], [0], [0], [1], [0, 0, 1, 1], [], []>} : vector<16x3xf32>, vector<3x64xf32>, vector<16x64xf32> -> vector<16x64xf32>
    %9 = vector.broadcast %5 : vector<1x64xf32> to vector<16x64xf32>
    %10 = arith.addf %8, %9 : vector<16x64xf32>
    %11 = tpu.iota {dimensions = array<i32: 1>} : vector<1x64xi32>
    %c0_11 = arith.constant 0 : index
    %c0_12 = arith.constant 0 : index
    %12 = vector.load %arg2[%c0_11, %c0_12] : memref<16x1xi32, #tpu.memory_space<vmem>>, vector<16x1xi32>
    %13 = vector.broadcast %11 : vector<1x64xi32> to vector<16x64xi32>
    %14 = vector.broadcast %12 : vector<16x1xi32> to vector<16x64xi32>
    %15 = arith.cmpi eq, %13, %14 : vector<16x64xi32>
    %cst_13 = arith.constant 0x7F800000 : f32
    %16 = vector.broadcast %cst_13 : f32 to vector<16x64xf32>
    %17 = arith.select %15, %16, %10 : vector<16x64xi1>, vector<16x64xf32>
    %cst_14 = arith.constant dense<0x7F800000> : vector<16xf32>
    %18 = vector.multi_reduction <minimumf>, %17, %cst_14 [1] : vector<16x64xf32> to vector<16xf32>
    %19 = vector.shape_cast %18 : vector<16xf32> to vector<16x1xf32>
    %20 = vector.broadcast %19 : vector<16x1xf32> to vector<16x64xf32>
    %21 = arith.cmpf oeq, %17, %20 : vector<16x64xf32>
    %c64_i32 = arith.constant 64 : i32
    %22 = vector.shape_cast %11 : vector<1x64xi32> to vector<1x64xi32>
    %23 = vector.broadcast %22 : vector<1x64xi32> to vector<16x64xi32>
    %24 = vector.broadcast %c64_i32 : i32 to vector<16x64xi32>
    %25 = arith.select %21, %23, %24 : vector<16x64xi1>, vector<16x64xi32>
    %cst_15 = arith.constant dense<2147483647> : vector<16xi32>
    %26 = vector.multi_reduction <minsi>, %25, %cst_15 [1] : vector<16x64xi32> to vector<16xi32>
    %27 = vector.shape_cast %26 : vector<16xi32> to vector<16x1xi32>
    %28 = vector.broadcast %11 : vector<1x64xi32> to vector<16x64xi32>
    %29 = vector.broadcast %27 : vector<16x1xi32> to vector<16x64xi32>
    %30 = arith.cmpi eq, %28, %29 : vector<16x64xi32>
    %cst_16 = arith.constant 0x7F800000 : f32
    %31 = vector.broadcast %cst_16 : f32 to vector<16x64xf32>
    %32 = arith.select %30, %31, %17 : vector<16x64xi1>, vector<16x64xf32>
    %cst_17 = arith.constant dense<0x7F800000> : vector<16xf32>
    %33 = vector.multi_reduction <minimumf>, %32, %cst_17 [1] : vector<16x64xf32> to vector<16xf32>
    %34 = vector.shape_cast %33 : vector<16xf32> to vector<16x1xf32>
    %35 = vector.broadcast %34 : vector<16x1xf32> to vector<16x64xf32>
    %36 = arith.cmpf oeq, %32, %35 : vector<16x64xf32>
    %c64_i32_18 = arith.constant 64 : i32
    %37 = vector.shape_cast %11 : vector<1x64xi32> to vector<1x64xi32>
    %38 = vector.broadcast %37 : vector<1x64xi32> to vector<16x64xi32>
    %39 = vector.broadcast %c64_i32_18 : i32 to vector<16x64xi32>
    %40 = arith.select %36, %38, %39 : vector<16x64xi1>, vector<16x64xi32>
    %cst_19 = arith.constant dense<2147483647> : vector<16xi32>
    %41 = vector.multi_reduction <minsi>, %40, %cst_19 [1] : vector<16x64xi32> to vector<16xi32>
    %42 = vector.shape_cast %41 : vector<16xi32> to vector<16x1xi32>
    %43 = vector.broadcast %11 : vector<1x64xi32> to vector<16x64xi32>
    %44 = vector.broadcast %42 : vector<16x1xi32> to vector<16x64xi32>
    %45 = arith.cmpi eq, %43, %44 : vector<16x64xi32>
    %cst_20 = arith.constant 0x7F800000 : f32
    %46 = vector.broadcast %cst_20 : f32 to vector<16x64xf32>
    %47 = arith.select %45, %46, %32 : vector<16x64xi1>, vector<16x64xf32>
    %cst_21 = arith.constant dense<0x7F800000> : vector<16xf32>
    %48 = vector.multi_reduction <minimumf>, %47, %cst_21 [1] : vector<16x64xf32> to vector<16xf32>
    %49 = vector.shape_cast %48 : vector<16xf32> to vector<16x1xf32>
    %50 = vector.broadcast %49 : vector<16x1xf32> to vector<16x64xf32>
    %51 = arith.cmpf oeq, %47, %50 : vector<16x64xf32>
    %c64_i32_22 = arith.constant 64 : i32
    %52 = vector.shape_cast %11 : vector<1x64xi32> to vector<1x64xi32>
    %53 = vector.broadcast %52 : vector<1x64xi32> to vector<16x64xi32>
    %54 = vector.broadcast %c64_i32_22 : i32 to vector<16x64xi32>
    %55 = arith.select %51, %53, %54 : vector<16x64xi1>, vector<16x64xi32>
    %cst_23 = arith.constant dense<2147483647> : vector<16xi32>
    %56 = vector.multi_reduction <minsi>, %55, %cst_23 [1] : vector<16x64xi32> to vector<16xi32>
    %57 = vector.shape_cast %56 : vector<16xi32> to vector<16x1xi32>
    %58 = vector.broadcast %11 : vector<1x64xi32> to vector<16x64xi32>
    %59 = vector.broadcast %57 : vector<16x1xi32> to vector<16x64xi32>
    %60 = arith.cmpi eq, %58, %59 : vector<16x64xi32>
    %cst_24 = arith.constant 0x7F800000 : f32
    %61 = vector.broadcast %cst_24 : f32 to vector<16x64xf32>
    %62 = arith.select %60, %61, %47 : vector<16x64xi1>, vector<16x64xf32>
    %cst_25 = arith.constant dense<0x7F800000> : vector<16xf32>
    %63 = vector.multi_reduction <minimumf>, %62, %cst_25 [1] : vector<16x64xf32> to vector<16xf32>
    %64 = vector.shape_cast %63 : vector<16xf32> to vector<16x1xf32>
    %65 = vector.broadcast %64 : vector<16x1xf32> to vector<16x64xf32>
    %66 = arith.cmpf oeq, %62, %65 : vector<16x64xf32>
    %c64_i32_26 = arith.constant 64 : i32
    %67 = vector.shape_cast %11 : vector<1x64xi32> to vector<1x64xi32>
    %68 = vector.broadcast %67 : vector<1x64xi32> to vector<16x64xi32>
    %69 = vector.broadcast %c64_i32_26 : i32 to vector<16x64xi32>
    %70 = arith.select %66, %68, %69 : vector<16x64xi1>, vector<16x64xi32>
    %cst_27 = arith.constant dense<2147483647> : vector<16xi32>
    %71 = vector.multi_reduction <minsi>, %70, %cst_27 [1] : vector<16x64xi32> to vector<16xi32>
    %72 = vector.shape_cast %71 : vector<16xi32> to vector<16x1xi32>
    %73 = vector.broadcast %11 : vector<1x64xi32> to vector<16x64xi32>
    %74 = vector.broadcast %72 : vector<16x1xi32> to vector<16x64xi32>
    %75 = arith.cmpi eq, %73, %74 : vector<16x64xi32>
    %76 = arith.extui %30 : vector<16x64xi1> to vector<16x64xi32>
    %77 = arith.sitofp %76 : vector<16x64xi32> to vector<16x64xf32>
    %78 = arith.extui %45 : vector<16x64xi1> to vector<16x64xi32>
    %79 = arith.sitofp %78 : vector<16x64xi32> to vector<16x64xf32>
    %80 = arith.extui %60 : vector<16x64xi1> to vector<16x64xi32>
    %81 = arith.sitofp %80 : vector<16x64xi32> to vector<16x64xf32>
    %82 = arith.extui %75 : vector<16x64xi1> to vector<16x64xi32>
    %83 = arith.sitofp %82 : vector<16x64xi32> to vector<16x64xf32>
    %84 = tpu.concatenate %77, %79, %81, %83 in 0 : vector<16x64xf32>, vector<16x64xf32>, vector<16x64xf32>, vector<16x64xf32> -> vector<64x64xf32>
    %cst_28 = arith.constant dense<0.000000e+00> : vector<64x128xf32>
    %85 = tpu.matmul %84, %7, %cst_28 {dimension_numbers = #tpu.dot_dimension_numbers<[1], [0], [0], [1], [0, 0, 1, 1], [], []>} : vector<64x64xf32>, vector<64x128xf32>, vector<64x128xf32> -> vector<64x128xf32>
    %86 = vector.shape_cast %85 : vector<64x128xf32> to vector<4x16x128xf32>
    %cst_29 = arith.constant dense<0xFF800000> : vector<16x128xf32>
    %87 = vector.multi_reduction <maximumf>, %86, %cst_29 [0] : vector<4x16x128xf32> to vector<16x128xf32>
    %c0_30 = arith.constant 0 : index
    %c0_31 = arith.constant 0 : index
    %c0_32 = arith.constant 0 : index
    %88 = vector.load %arg7[%c0_30, %c0_31, %c0_32] : memref<1x16x128xf32, #tpu.memory_space<vmem>>, vector<1x16x128xf32>
    %89 = vector.shape_cast %88 : vector<1x16x128xf32> to vector<16x128xf32>
    %90 = vector.shape_cast %87 : vector<16x128xf32> to vector<1x16x128xf32>
    tpu.vector_store %arg7[%c0_30, %c0_31, %c0_32], %90 {strides = array<i32>} : memref<1x16x128xf32, #tpu.memory_space<vmem>>, vector<1x16x128xf32>,
    return
  }
  func.func @transform_0(%arg0: i32, %arg1: i32) -> (i32, i32) {
    %c0_i32 = arith.constant 0 : i32
    %c0_i32_0 = arith.constant 0 : i32
    return %arg1, %c0_i32 : i32, i32
  }
  func.func @transform_1(%arg0: i32, %arg1: i32) -> (i32, i32, i32) {
    %c0_i32 = arith.constant 0 : i32
    %c0_i32_0 = arith.constant 0 : i32
    return %arg0, %arg1, %c0_i32 : i32, i32, i32
  }
  func.func @transform_2(%arg0: i32, %arg1: i32) -> (i32, i32, i32) {
    %c0_i32 = arith.constant 0 : i32
    %c0_i32_0 = arith.constant 0 : i32
    %c0_i32_1 = arith.constant 0 : i32
    return %arg0, %c0_i32, %c0_i32_0 : i32, i32, i32
  }
  func.func @transform_3(%arg0: i32, %arg1: i32) -> (i32, i32, i32) {
    %c0_i32 = arith.constant 0 : i32
    %c0_i32_0 = arith.constant 0 : i32
    %c0_i32_1 = arith.constant 0 : i32
    return %arg0, %c0_i32, %c0_i32_0 : i32, i32, i32
  }
  func.func @transform_4(%arg0: i32, %arg1: i32) -> (i32, i32, i32) {
    %c0_i32 = arith.constant 0 : i32
    %c0_i32_0 = arith.constant 0 : i32
    %c0_i32_1 = arith.constant 0 : i32
    return %arg0, %c0_i32, %c0_i32_0 : i32, i32, i32
  }
  func.func @transform_5(%arg0: i32, %arg1: i32) -> (i32, i32, i32) {
    %c0_i32 = arith.constant 0 : i32
    %c0_i32_0 = arith.constant 0 : i32
    return %arg0, %arg1, %c0_i32 : i32, i32, i32
  }
}

</mosaic_0001>

<llo_original>
// kernel: tpu_custom_call.1
$region0: #{tpu_custom_call.1}
  #allocation0 [shape = 'u32[]', space=smem, size = 0x4, offset = 0x4, fixed_abs, tag = 'smem constant byte address 0x4 - core index']
  #allocation1 [shape = 'u32[144,128]{1,0:T(1,128)}', space=vmem, size = 0x12000, scoped, tag = 'internal scratch']
  %s0 = inlined_call_operand.vmem [shape: s32[16,1], index: 0, kind: input, shape index: {}]
  %s1 = inlined_call_operand.vmem [shape: f32[2,16,3], index: 1, kind: input, shape index: {}]
  %s2 = inlined_call_operand.vmem [shape: f32[2,3,64], index: 2, kind: input, shape index: {}]
  %s3 = inlined_call_operand.vmem [shape: f32[2,1,64], index: 3, kind: input, shape index: {}]
  %s4 = inlined_call_operand.hbm [shape: f32[2,64,128], index: 4, kind: input, shape index: {}]
  %s5 = inlined_call_operand.hbm [shape: f32[2,16,128], index: 5, kind: output, shape index: {}]
  %s6 = sld [smem:[#allocation0]]
  $region57: #{tpu_custom_call.1} parent=0
    _
  %s8 = ssub.s32 1, %s6
  %s9 = scalar_select 0, %s8, %s6
  $region1: #{tpu_custom_call.1} parent=0
    #allocation2 [shape = 'u8[65536]{0}', space=vmem, size = 0x10000, scoped, tag = 'input window, operand 4']
    #allocation3 [shape = 's32[2]{0}', space=sflag, size = 0x8, scoped, tag = 'scoped memory for tpu_custom_call.1']
    #allocation4 [shape = 's32[2]{0}', space=sflag, size = 0x8, scoped, tag = 'scoped memory for tpu_custom_call.1']
    #allocation5 [shape = 'u8[16384]{0}', space=vmem, size = 0x4000, scoped, tag = 'output window, operand 0']
    %10 = vsyncpa [#allocation3], 0
    %s11 = scalar_lea.sflag [#allocation3], 1
    %12 = vsyncpa %s11, 0
    %13 = vsyncpa [#allocation4], 0
    %s14 = scalar_lea.sflag [#allocation4], 1
    %15 = vsyncpa %s14, 0
    loop: start=0, step=1, limit=4
    $region2: #{tpu_custom_call.1} parent=1 // loop_pre_header
      _
    $region3: #{tpu_custom_call.1} parent=1 // loop_header
      %s17 = sphi 0, %s21
      %p18 = scmp.ge.s32.totalorder %s17, 4
      %s24 = sphi 0, %s36
      %s25 = sphi 0, %s32
      %s26 = sphi 0, %s24
      %s27 = sphi 0, %s25
      %s28 = sphi 0, %s26
      %s29 = sphi 0, %s27
      %s39 = sphi 0, %s41
      %s42 = sphi 0, %s39
      %s43 = sphi 0, %s42
      %s59 = sphi 0, %s43
      %s67 = sphi 0, %s69
      %s70 = sphi 0, %s67
      %s71 = sphi 0, %s70
      %s87 = sphi 0, %s71
      %s93 = sphi 0, %s95
      %s96 = sphi 0, %s93
      %s97 = sphi 0, %s96
      %s113 = sphi 0, %s97
      %s119 = sphi 0, %s121
      %s122 = sphi 0, %s119
      %s123 = sphi 0, %s122
      %s139 = sphi 0, %s123
      %s145 = sphi 0, %s147
      %s148 = sphi 0, %s145
      %s149 = sphi 0, %s148
      %s165 = sphi 0, %s149
      %s173 = sphi 0, %s175
      %s176 = sphi 0, %s173
      %s177 = sphi 0, %s176
      %s193 = sphi 0, %s177
    $region4: #{tpu_custom_call.1} parent=1 // loop_header_branch
      %20 = sbr.rel (%p18) target = $region8
    $region5: #{tpu_custom_call.1} parent=1 // loop_body
      %s22 = ssub.s32 %s17, 1
      %s23 = ssub.s32 %s17, 2
      %s30 = sadd.s32 1, %s25
      %p31 = scmp.ge.s32.totalorder %s30, 1
      %s32 = scalar_select %p31, 0, %s30
      %s33 = sadd.s32 1, %s24
      %s34 = scalar_select %p31, %s33, %s24
      %p35 = scmp.ge.s32.totalorder %s34, 2
      %s36 = scalar_select %p35, 0, %s34
      %s37 = ssub.s32 %s25, %s32
      %p38 = scmp.eq.s32.totalorder %s37, 0
      %s40 = sadd.s32 %s39, 1
      %s41 = scalar_select %p38, %s39, %s40
      %p44 = pneg %p38
      %p45 = scmp.eq.s32.totalorder %s17, 1
      %p46 = por %p44, %p45
      %p47 = scmp.ne.s32.totalorder %s39, %s42
      %p48 = scmp.eq.s32.totalorder %s17, 0
      %p49 = por %p47, %p48
      %p50 = scmp.ne.s32.totalorder %s39, %s42
      %p51 = scmp.eq.s32.totalorder %s22, 1
      %p52 = por %p50, %p51
      %p53 = scmp.ne.s32.totalorder %s42, %s43
      %p54 = scmp.eq.s32.totalorder %s22, 0
      %p55 = por %p53, %p54
      %p56 = scmp.ne.s32.totalorder %s42, %s43
      %p57 = scmp.eq.s32.totalorder %s23, 1
      %p58 = por %p56, %p57
      %p60 = scmp.ne.s32.totalorder %s43, %s59
      %p61 = scmp.eq.s32.totalorder %s23, 0
      %p62 = por %p60, %p61
      %s63 = ssub.s32 %s24, %s36
      %s64 = ssub.s32 %s25, %s32
      %s65 = sor.u32 %s63, %s64
      %p66 = scmp.eq.s32.totalorder %s65, 0
      %s68 = sadd.s32 %s67, 1
      %s69 = scalar_select %p66, %s67, %s68
      %p72 = pneg %p66
      %p73 = scmp.eq.s32.totalorder %s17, 1
      %p74 = por %p72, %p73
      %p75 = scmp.ne.s32.totalorder %s67, %s70
      %p76 = scmp.eq.s32.totalorder %s17, 0
      %p77 = por %p75, %p76
      %p78 = scmp.ne.s32.totalorder %s67, %s70
      %p79 = scmp.eq.s32.totalorder %s22, 1
      %p80 = por %p78, %p79
      %p81 = scmp.ne.s32.totalorder %s70, %s71
      %p82 = scmp.eq.s32.totalorder %s22, 0
      %p83 = por %p81, %p82
      %p84 = scmp.ne.s32.totalorder %s70, %s71
      %p85 = scmp.eq.s32.totalorder %s23, 1
      %p86 = por %p84, %p85
      %p88 = scmp.ne.s32.totalorder %s71, %s87
      %p89 = scmp.eq.s32.totalorder %s23, 0
      %p90 = por %p88, %p89
      %s91 = ssub.s32 %s24, %s36
      %p92 = scmp.eq.s32.totalorder %s91, 0
      %s94 = sadd.s32 %s93, 1
      %s95 = scalar_select %p92, %s93, %s94
      %p98 = pneg %p92
      %p99 = scmp.eq.s32.totalorder %s17, 1
      %p100 = por %p98, %p99
      %p101 = scmp.ne.s32.totalorder %s93, %s96
      %p102 = scmp.eq.s32.totalorder %s17, 0
      %p103 = por %p101, %p102
      %p104 = scmp.ne.s32.totalorder %s93, %s96
      %p105 = scmp.eq.s32.totalorder %s22, 1
      %p106 = por %p104, %p105
      %p107 = scmp.ne.s32.totalorder %s96, %s97
      %p108 = scmp.eq.s32.totalorder %s22, 0
      %p109 = por %p107, %p108
      %p110 = scmp.ne.s32.totalorder %s96, %s97
      %p111 = scmp.eq.s32.totalorder %s23, 1
      %p112 = por %p110, %p111
      %p114 = scmp.ne.s32.totalorder %s97, %s113
      %p115 = scmp.eq.s32.totalorder %s23, 0
      %p116 = por %p114, %p115
      %s117 = ssub.s32 %s24, %s36
      %p118 = scmp.eq.s32.totalorder %s117, 0
      %s120 = sadd.s32 %s119, 1
      %s121 = scalar_select %p118, %s119, %s120
      %p124 = pneg %p118
      %p125 = scmp.eq.s32.totalorder %s17, 1
      %p126 = por %p124, %p125
      %p127 = scmp.ne.s32.totalorder %s119, %s122
      %p128 = scmp.eq.s32.totalorder %s17, 0
      %p129 = por %p127, %p128
      %p130 = scmp.ne.s32.totalorder %s119, %s122
      %p131 = scmp.eq.s32.totalorder %s22, 1
      %p132 = por %p130, %p131
      %p133 = scmp.ne.s32.totalorder %s122, %s123
      %p134 = scmp.eq.s32.totalorder %s22, 0
      %p135 = por %p133, %p134
      %p136 = scmp.ne.s32.totalorder %s122, %s123
      %p137 = scmp.eq.s32.totalorder %s23, 1
      %p138 = por %p136, %p137
      %p140 = scmp.ne.s32.totalorder %s123, %s139
      %p141 = scmp.eq.s32.totalorder %s23, 0
      %p142 = por %p140, %p141
      %s143 = ssub.s32 %s24, %s36
      %p144 = scmp.eq.s32.totalorder %s143, 0
      %s146 = sadd.s32 %s145, 1
      %s147 = scalar_select %p144, %s145, %s146
      %p150 = pneg %p144
      %p151 = scmp.eq.s32.totalorder %s17, 1
      %p152 = por %p150, %p151
      %p153 = scmp.ne.s32.totalorder %s145, %s148
      %p154 = scmp.eq.s32.totalorder %s17, 0
      %p155 = por %p153, %p154
      %p156 = scmp.ne.s32.totalorder %s145, %s148
      %p157 = scmp.eq.s32.totalorder %s22, 1
      %p158 = por %p156, %p157
      %p159 = scmp.ne.s32.totalorder %s148, %s149
      %p160 = scmp.eq.s32.totalorder %s22, 0
      %p161 = por %p159, %p160
      %p162 = scmp.ne.s32.totalorder %s148, %s149
      %p163 = scmp.eq.s32.totalorder %s23, 1
      %p164 = por %p162, %p163
      %p166 = scmp.ne.s32.totalorder %s149, %s165
      %p167 = scmp.eq.s32.totalorder %s23, 0
      %p168 = por %p166, %p167
      %s169 = ssub.s32 %s24, %s36
      %s170 = ssub.s32 %s25, %s32
      %s171 = sor.u32 %s169, %s170
      %p172 = scmp.eq.s32.totalorder %s171, 0
      %s174 = sadd.s32 %s173, 1
      %s175 = scalar_select %p172, %s173, %s174
      %p178 = pneg %p172
      %p179 = scmp.eq.s32.totalorder %s17, 1
      %p180 = por %p178, %p179
      %p181 = scmp.ne.s32.totalorder %s173, %s176
      %p182 = scmp.eq.s32.totalorder %s17, 0
      %p183 = por %p181, %p182
      %p184 = scmp.ne.s32.totalorder %s173, %s176
      %p185 = scmp.eq.s32.totalorder %s22, 1
      %p186 = por %p184, %p185
      %p187 = scmp.ne.s32.totalorder %s176, %s177
      %p188 = scmp.eq.s32.totalorder %s22, 0
      %p189 = por %p187, %p188
      %p190 = scmp.ne.s32.totalorder %s176, %s177
      %p191 = scmp.eq.s32.totalorder %s23, 1
      %p192 = por %p190, %p191
      %p194 = scmp.ne.s32.totalorder %s177, %s193
      %p195 = scmp.eq.s32.totalorder %s23, 0
      %p196 = por %p194, %p195
      %p197 = scmp.le.s32.totalorder 1, %s17
      %p198 = scmp.lt.s32.totalorder %s17, 3
      %p199 = pnand %p197, %p198
      %p200 = pneg %p199
      // Predicated region
      $region9: #{tpu_custom_call.1} parent=5 // pred_check
        _
      $region10: #{tpu_custom_call.1} parent=5 // pred_check_branch
        %202 = sbr.rel (%p199) target = $region12
      $region11: #{tpu_custom_call.1} parent=5 // pred_region
        %s203 = ssub.s32 %s17, 1
        // Predicated region
        $region13: #{tpu_custom_call.1} parent=11 // pred_check
          %p204 = pneg %p55
        $region14: #{tpu_custom_call.1} parent=11 // pred_check_branch
          %206 = sbr.rel (%p204) target = $region16
        $region15: #{tpu_custom_call.1} parent=11 // pred_region
          %s207 = smul.u32 2, %s27
          %p208 = scmp.lt.s32.totalorder %s207, 1
          %s209 = scalar_select %p208, %s207, 1
          %s210 = smul.addr %s209, 8
          %s211 = scalar_lea.vmem %s0, %s210
          %s212 = smul.u32 2, %s27
        $region16: #{tpu_custom_call.1} parent=11 // pred_fallthru
          _
      $region12: #{tpu_custom_call.1} parent=5 // pred_fallthru
        _
      %p213 = scmp.lt.s32.totalorder %s17, 2
      // Predicated region
      $region17: #{tpu_custom_call.1} parent=5 // pred_check
        %p214 = pneg %p213
      $region18: #{tpu_custom_call.1} parent=5 // pred_check_branch
        %216 = sbr.rel (%p214) target = $region20
      $region19: #{tpu_custom_call.1} parent=5 // pred_region
        // Predicated region
        $region21: #{tpu_custom_call.1} parent=19 // pred_check
          %p217 = pneg %p77
        $region22: #{tpu_custom_call.1} parent=19 // pred_check_branch
          %219 = sbr.rel (%p217) target = $region24
        $region23: #{tpu_custom_call.1} parent=19 // pred_region
          %s220 = smul.u32 2, %s25
          %p221 = scmp.lt.s32.totalorder %s24, 1
          %s222 = scalar_select %p221, %s24, 1
          %p223 = scmp.lt.s32.totalorder %s220, 1
          %s224 = scalar_select %p223, %s220, 1
          %s225 = smul.addr %s222, 2
          %s226 = sadd.s32 %s224, %s225
          %s227 = smul.addr %s226, 8
          %s228 = scalar_lea.vmem %s1, %s227
          %s229 = smul.u32 2, %s25
        $region24: #{tpu_custom_call.1} parent=19 // pred_fallthru
          _
        // Predicated region
        $region25: #{tpu_custom_call.1} parent=19 // pred_check
          %p230 = pneg %p103
        $region26: #{tpu_custom_call.1} parent=19 // pred_check_branch
          %232 = sbr.rel (%p230) target = $region28
        $region27: #{tpu_custom_call.1} parent=19 // pred_region
          %p233 = scmp.lt.s32.totalorder %s24, 1
          %s234 = scalar_select %p233, %s24, 1
          %s235 = smul.addr %s234, 4
          %s236 = scalar_lea.vmem %s2, %s235
        $region28: #{tpu_custom_call.1} parent=19 // pred_fallthru
          _
        // Predicated region
        $region29: #{tpu_custom_call.1} parent=19 // pred_check
          %p237 = pneg %p129
        $region30: #{tpu_custom_call.1} parent=19 // pred_check_branch
          %239 = sbr.rel (%p237) target = $region32
        $region31: #{tpu_custom_call.1} parent=19 // pred_region
          %p240 = scmp.lt.s32.totalorder %s24, 1
          %s241 = scalar_select %p240, %s24, 1
          %s242 = scalar_lea.vmem %s3, %s241
        $region32: #{tpu_custom_call.1} parent=19 // pred_fallthru
          _
        // Predicated region
        $region33: #{tpu_custom_call.1} parent=19 // pred_check
          %p243 = pneg %p155
        $region34: #{tpu_custom_call.1} parent=19 // pred_check_branch
          %245 = sbr.rel (%p243) target = $region36
        $region35: #{tpu_custom_call.1} parent=19 // pred_region
          %s246 = sand.u32 %s145, 1
          %s247 = scalar_lea.sflag [#allocation3], %s246
          %s248 = sand.u32 %s145, 1
          %s249 = smul.addr %s248, 64
          %s250 = scalar_lea.vmem [#allocation2], %s249
          %s252 = ssub.s32 1024, 1024
          %253 = vsyncadd %s247, %s252
          %s254 = smul.addr %s24, 8
          %s255 = smul.addr %s254, 128
          %s256 = scalar_lea.hbm %s4, %s255
          %s257 = sshll.u32 %s250, 4
          %s258 = int_to_ptr.vmem [resolvable:$true] %s257
          %263 = dma.hbm_to_vmem [thread:$0]  %s256, 1024, %s258, %s247, 128, 128, 8
        $region36: #{tpu_custom_call.1} parent=19 // pred_fallthru
          _
      $region20: #{tpu_custom_call.1} parent=5 // pred_fallthru
        _
      %p264 = scmp.le.s32.totalorder 1, %s17
      %p265 = scmp.lt.s32.totalorder %s17, 3
      %p266 = pnand %p264, %p265
      %p267 = pneg %p266
      // Predicated region
      $region37: #{tpu_custom_call.1} parent=5 // pred_check
        _
      $region38: #{tpu_custom_call.1} parent=5 // pred_check_branch
        %269 = sbr.rel (%p266) target = $region40
      $region39: #{tpu_custom_call.1} parent=5 // pred_region
        %s270 = ssub.s32 %s17, 1
        %s271 = sand.u32 %s148, 1
        %s272 = scalar_lea.sflag [#allocation3], %s271
        %s273 = sand.u32 %s148, 1
        %s274 = smul.addr %s273, 64
        %s275 = scalar_lea.vmem [#allocation2], %s274
        // Predicated region
        $region41: #{tpu_custom_call.1} parent=39 // pred_check
          %p276 = pneg %p161
        $region42: #{tpu_custom_call.1} parent=39 // pred_check_branch
          %278 = sbr.rel (%p276) target = $region44
        $region43: #{tpu_custom_call.1} parent=39 // pred_region
          %279 = dma.done %s272, 1024
        $region44: #{tpu_custom_call.1} parent=39 // pred_fallthru
          _
        %s280 = smul.u32 2, %s27
        %p281 = scmp.lt.s32.totalorder %s280, 1
        %s282 = scalar_select %p281, %s280, 1
        %s283 = smul.addr %s282, 8
        %s284 = scalar_lea.vmem %s0, %s283
        %p285 = pneg %p55
        %p286 = pneg %p52
        %s287 = smul.u32 2, %s27
        %p288 = scmp.lt.s32.totalorder %s26, 1
        %s289 = scalar_select %p288, %s26, 1
        %p290 = scmp.lt.s32.totalorder %s287, 1
        %s291 = scalar_select %p290, %s287, 1
        %s292 = smul.addr %s289, 2
        %s293 = sadd.s32 %s291, %s292
        %s294 = smul.addr %s293, 8
        %s295 = scalar_lea.vmem %s1, %s294
        %p296 = pneg %p83
        %p297 = pneg %p80
        %p298 = scmp.lt.s32.totalorder %s26, 1
        %s299 = scalar_select %p298, %s26, 1
        %s300 = smul.addr %s299, 4
        %s301 = scalar_lea.vmem %s2, %s300
        %p302 = pneg %p109
        %p303 = pneg %p106
        %p304 = scmp.lt.s32.totalorder %s26, 1
        %s305 = scalar_select %p304, %s26, 1
        %s306 = scalar_lea.vmem %s3, %s305
        %p307 = pneg %p135
        %p308 = pneg %p132
        %s309 = sand.u32 %s148, 1
        %s310 = scalar_lea.sflag [#allocation3], %s309
        %s311 = sand.u32 %s148, 1
        %s312 = smul.addr %s311, 64
        %s313 = scalar_lea.vmem [#allocation2], %s312
        %p314 = pneg %p161
        %p315 = pneg %p158
        %p316 = pneg %p189
        %p317 = pneg %p186
        %s318 = sand.u32 %s176, 1
        %s319 = scalar_lea.sflag [#allocation4], %s318
        %s320 = sand.u32 %s176, 1
        %s321 = smul.addr %s320, 16
        %s322 = scalar_lea.vmem [#allocation5], %s321
        %s323 = smul.u32 2, %s27
        %p324 = scmp.lt.s32.totalorder %s323, 1
        %s325 = scalar_select %p324, %s323, 1
        %s326 = smul.addr %s325, 8
        %s327 = scalar_lea.vmem %s0, %s326
        %s328 = smul.u32 2, %s27
        %s329 = smul.u32 2, %s27
        %p330 = scmp.lt.s32.totalorder %s26, 1
        %s331 = scalar_select %p330, %s26, 1
        %p332 = scmp.lt.s32.totalorder %s329, 1
        %s333 = scalar_select %p332, %s329, 1
        %s334 = smul.addr %s331, 2
        %s335 = sadd.s32 %s333, %s334
        %s336 = smul.addr %s335, 8
        %s337 = scalar_lea.vmem %s1, %s336
        %s338 = smul.u32 2, %s27
        %p339 = scmp.lt.s32.totalorder %s26, 1
        %s340 = scalar_select %p339, %s26, 1
        %s341 = smul.addr %s340, 4
        %s342 = scalar_lea.vmem %s2, %s341
        %p343 = scmp.lt.s32.totalorder %s26, 1
        %s344 = scalar_select %p343, %s26, 1
        %s345 = scalar_lea.vmem %s3, %s344
        %s346 = smul.u32 2, %s27
        %v347 = vld [vmem:[%s337] sm:$0xff]
        %v348 = vld [vmem:[%s337 + $0x8] sm:$0xff]
        %v349 = vld [vmem:[%s342] sm:$0x7]
        %v350 = vld [vmem:[%s345] sm:$0x1]
        %v351 = vld [vmem:[%s275] sm:$0xff]
        %v352 = vld [vmem:[%s275 + $0x8] sm:$0xff]
        %v353 = vld [vmem:[%s275 + $0x10] sm:$0xff]
        %v354 = vld [vmem:[%s275 + $0x18] sm:$0xff]
        %v355 = vld [vmem:[%s275 + $0x20] sm:$0xff]
        %v356 = vld [vmem:[%s275 + $0x28] sm:$0xff]
        %v357 = vld [vmem:[%s275 + $0x30] sm:$0xff]
        %v358 = vld [vmem:[%s275 + $0x38] sm:$0xff]
        %v360 = vlaneseq
        %v361 = vshrl.u32 %v360, 7
        %v362 = vsub.s32 0, %v361
        %v363 = vrot.slane %v350, %v362
        %vm365 = vcmask 23552
        %v367 = vsel %vm365, %v347, 0
        %v370 = vsel %vm365, %v348, 0
        %vm372 = vcmask 1042432
        %v374 = vsel %vm372, %v349, 0
        %376 = vmatprep.subr.mxu0 0.0
        %377 = vmatpush1.msra.mxu0 %v374
        %378 = vmatprep.subr.mxu0 0.0
        %379 = vmatpush1.msra.mxu0 0.0
        %380 = vmatprep.subr.mxu0 0.0
        %381 = vmatpush1.msra.mxu0 0.0
        %382 = vmatprep.subr.mxu0 0.0
        %383 = vmatpush1.msra.mxu0 0.0
        %384 = vmatprep.subr.mxu0 0.0
        %385 = vmatpush1.msra.mxu0 0.0
        %386 = vmatprep.subr.mxu0 0.0
        %387 = vmatpush1.msra.mxu0 0.0
        %388 = vmatprep.subr.mxu0 0.0
        %389 = vmatpush1.msra.mxu0 0.0
        %390 = vmatprep.subr.mxu0 0.0
        %391 = vmatpush1.msra.mxu0 0.0
        %392 = vmatprep.subr.mxu0 0.0
        %393 = vmatpush1.msra.mxu0 0.0
        %394 = vmatprep.subr.mxu0 0.0
        %395 = vmatpush1.msra.mxu0 0.0
        %396 = vmatprep.subr.mxu0 0.0
        %397 = vmatpush1.msra.mxu0 0.0
        %398 = vmatprep.subr.mxu0 0.0
        %399 = vmatpush1.msra.mxu0 0.0
        %400 = vmatprep.subr.mxu0 0.0
        %401 = vmatpush1.msra.mxu0 0.0
        %402 = vmatprep.subr.mxu0 0.0
        %403 = vmatpush1.msra.mxu0 0.0
        %404 = vmatprep.subr.mxu0 0.0
        %405 = vmatpush1.msra.mxu0 0.0
        %406 = vmatprep.subr.mxu0 0.0
        %407 = vmatpush1.msra.mxu0 0.0
        %408 = vmatprep.subr.mxu0 0.0
        %409 = vmatpush1.msra.mxu0 0.0
        %410 = vmatprep.subr.mxu0 0.0
        %411 = vmatpush1.msra.mxu0 0.0
        %412 = vmatprep.subr.mxu0 0.0
        %413 = vmatpush1.msra.mxu0 0.0
        %414 = vmatprep.subr.mxu0 0.0
        %415 = vmatpush1.msra.mxu0 0.0
        %416 = vmatprep.subr.mxu0 0.0
        %417 = vmatpush1.msra.mxu0 0.0
        %418 = vmatprep.subr.mxu0 0.0
        %419 = vmatpush1.msra.mxu0 0.0
        %420 = vmatprep.subr.mxu0 0.0
        %421 = vmatpush1.msra.mxu0 0.0
        %422 = vmatprep.subr.mxu0 0.0
        %423 = vmatpush1.msra.mxu0 0.0
        %424 = vmatprep.subr.mxu0 0.0
        %425 = vmatpush1.msra.mxu0 0.0
        %426 = vmatprep.subr.mxu0 0.0
        %427 = vmatpush1.msra.mxu0 0.0
        %428 = vmatprep.subr.mxu0 0.0
        %429 = vmatpush1.msra.mxu0 0.0
        %430 = vmatprep.subr.mxu0 0.0
        %431 = vmatpush1.msra.mxu0 0.0
        %432 = vmatprep.subr.mxu0 0.0
        %433 = vmatpush1.msra.mxu0 0.0
        %434 = vmatprep.subr.mxu0 0.0
        %435 = vmatpush1.msra.mxu0 0.0
        %436 = vmatprep.subr.mxu0 0.0
        %437 = vmatpush1.msra.mxu0 0.0
        %438 = vmatprep.subr.mxu0 0.0
        %439 = vmatpush1.msra.mxu0 0.0
        %440 = vmatprep.mubr.f32.mxu0 0.0
        %441 = vmatmul.mubr.f32.gmra.mrb[0].mxu0 %v367
        %v442 = vpop.f32.mrb[0].mxu0
        %v443 = vadd.f32 %v363, %v442
        %v444 = vpop.f32.mrb[0].mxu0
        %445 = vmatprep.mubr.f32.mxu0 0.0
        %446 = vmatmul.mubr.f32.gmra.mrb[0].mxu0 %v370
        %v447 = vpop.f32.mrb[0].mxu0
        %v448 = vadd.f32 %v363, %v447
        %v449 = vpop.f32.mrb[0].mxu0
        %450 = vdwg.mxu0
        %v451 = vlaneseq
        %v452 = vand.u32 %v451, 127
        %v453 = vld [vmem:[%s327] sm:$0xff]
        %v454 = vld [vmem:[%s327 + $0x8] sm:$0xff]
        %455 = vset.pattern.permute.xlu0 0
        %456 = vperm.xlu0 %455, %v453
        %v457 = vpop.permute.xlu0 %456
        %458 = vset.pattern.permute.xlu0 0
        %459 = vperm.xlu0 %458, %v454
        %v460 = vpop.permute.xlu0 %459
        %vm461 = vcmp.eq.s32.totalorder %v452, %v457
        %vm462 = vcmp.eq.s32.totalorder %v452, %v460
        %v463 = vsel %vm461, inf, %v443
        %v464 = vsel %vm462, inf, %v448
        %vm465 = vcmask 523264
        %v466 = vsel %vm465, %v463, inf
        %467 = vmin.xlane.f32.xlu0 %v466
        %v468 = vpop.xlane.xlu0 %467
        %v469 = vsel %vm465, %v464, inf
        %470 = vmin.xlane.f32.xlu0 %v469
        %v471 = vpop.xlane.xlu0 %470
        %vm472 = vcmp.eq.f32.partialorder %v463, %v468
        %vm473 = vcmp.eq.f32.partialorder %v464, %v471
        %v474 = vsel %vm472, %v452, 64
        %v475 = vsel %vm473, %v452, 64
        %v476 = vsel %vm465, %v474, 2147483647
        %v477 = vand.u32 %v476, 65535
        %v478 = vshra.s32 %v476, 16
        %v479 = vcvt.s32.f32 %v477
        %v480 = vcvt.s32.f32 %v478
        %481 = vmin.xlane.f32.xlu0 %v480
        %v482 = vpop.xlane.xlu0 %481
        %vm483 = vcmp.eq.f32.partialorder %v480, %v482
        %v484 = vsel %vm483, %v479, inf
        %485 = vmin.xlane.f32.xlu0 %v484
        %v486 = vpop.xlane.xlu0 %485
        %v487 = vcvt.f32.s32 %v486
        %v488 = vcvt.f32.s32 %v482
        %v489 = vshll.u32 %v488, 16
        %v490 = vadd.s32 %v489, %v487
        %v491 = vsel %vm465, %v475, 2147483647
        %v492 = vand.u32 %v491, 65535
        %v493 = vshra.s32 %v491, 16
        %v494 = vcvt.s32.f32 %v492
        %v495 = vcvt.s32.f32 %v493
        %496 = vmin.xlane.f32.xlu0 %v495
        %v497 = vpop.xlane.xlu0 %496
        %vm498 = vcmp.eq.f32.partialorder %v495, %v497
        %v499 = vsel %vm498, %v494, inf
        %500 = vmin.xlane.f32.xlu0 %v499
        %v501 = vpop.xlane.xlu0 %500
        %v502 = vcvt.f32.s32 %v501
        %v503 = vcvt.f32.s32 %v497
        %v504 = vshll.u32 %v503, 16
        %v505 = vadd.s32 %v504, %v502
        %vm506 = vcmp.eq.s32.totalorder %v452, %v490
        %vm507 = vcmp.eq.s32.totalorder %v452, %v505
        %v508 = vsel %vm506, inf, %v463
        %v509 = vsel %vm507, inf, %v464
        %v510 = vsel %vm465, %v508, inf
        %511 = vmin.xlane.f32.xlu0 %v510
        %v512 = vpop.xlane.xlu0 %511
        %v513 = vsel %vm465, %v509, inf
        %514 = vmin.xlane.f32.xlu0 %v513
        %v515 = vpop.xlane.xlu0 %514
        %vm516 = vcmp.eq.f32.partialorder %v508, %v512
        %vm517 = vcmp.eq.f32.partialorder %v509, %v515
        %v518 = vsel %vm516, %v452, 64
        %v519 = vsel %vm517, %v452, 64
        %v520 = vsel %vm465, %v518, 2147483647
        %v521 = vand.u32 %v520, 65535
        %v522 = vshra.s32 %v520, 16
        %v523 = vcvt.s32.f32 %v521
        %v524 = vcvt.s32.f32 %v522
        %525 = vmin.xlane.f32.xlu0 %v524
        %v526 = vpop.xlane.xlu0 %525
        %vm527 = vcmp.eq.f32.partialorder %v524, %v526
        %v528 = vsel %vm527, %v523, inf
        %529 = vmin.xlane.f32.xlu0 %v528
        %v530 = vpop.xlane.xlu0 %529
        %v531 = vcvt.f32.s32 %v530
        %v532 = vcvt.f32.s32 %v526
        %v533 = vshll.u32 %v532, 16
        %v534 = vadd.s32 %v533, %v531
        %v535 = vsel %vm465, %v519, 2147483647
        %v536 = vand.u32 %v535, 65535
        %v537 = vshra.s32 %v535, 16
        %v538 = vcvt.s32.f32 %v536
        %v539 = vcvt.s32.f32 %v537
        %540 = vmin.xlane.f32.xlu0 %v539
        %v541 = vpop.xlane.xlu0 %540
        %vm542 = vcmp.eq.f32.partialorder %v539, %v541
        %v543 = vsel %vm542, %v538, inf
        %544 = vmin.xlane.f32.xlu0 %v543
        %v545 = vpop.xlane.xlu0 %544
        %v546 = vcvt.f32.s32 %v545
        %v547 = vcvt.f32.s32 %v541
        %v548 = vshll.u32 %v547, 16
        %v549 = vadd.s32 %v548, %v546
        %vm550 = vcmp.eq.s32.totalorder %v452, %v534
        %vm551 = vcmp.eq.s32.totalorder %v452, %v549
        %v552 = vsel %vm550, inf, %v508
        %v553 = vsel %vm551, inf, %v509
        %v554 = vsel %vm465, %v552, inf
        %555 = vmin.xlane.f32.xlu0 %v554
        %v556 = vpop.xlane.xlu0 %555
        %v557 = vsel %vm465, %v553, inf
        %558 = vmin.xlane.f32.xlu0 %v557
        %v559 = vpop.xlane.xlu0 %558
        %vm560 = vcmp.eq.f32.partialorder %v552, %v556
        %vm561 = vcmp.eq.f32.partialorder %v553, %v559
        %v562 = vsel %vm560, %v452, 64
        %v563 = vsel %vm561, %v452, 64
        %v564 = vsel %vm465, %v562, 2147483647
        %v565 = vand.u32 %v564, 65535
        %v566 = vshra.s32 %v564, 16
        %v567 = vcvt.s32.f32 %v565
        %v568 = vcvt.s32.f32 %v566
        %569 = vmin.xlane.f32.xlu0 %v568
        %v570 = vpop.xlane.xlu0 %569
        %vm571 = vcmp.eq.f32.partialorder %v568, %v570
        %v572 = vsel %vm571, %v567, inf
        %573 = vmin.xlane.f32.xlu0 %v572
        %v574 = vpop.xlane.xlu0 %573
        %v575 = vcvt.f32.s32 %v574
        %v576 = vcvt.f32.s32 %v570
        %v577 = vshll.u32 %v576, 16
        %v578 = vadd.s32 %v577, %v575
        %v579 = vsel %vm465, %v563, 2147483647
        %v580 = vand.u32 %v579, 65535
        %v581 = vshra.s32 %v579, 16
        %v582 = vcvt.s32.f32 %v580
        %v583 = vcvt.s32.f32 %v581
        %584 = vmin.xlane.f32.xlu0 %v583
        %v585 = vpop.xlane.xlu0 %584
        %vm586 = vcmp.eq.f32.partialorder %v583, %v585
        %v587 = vsel %vm586, %v582, inf
        %588 = vmin.xlane.f32.xlu0 %v587
        %v589 = vpop.xlane.xlu0 %588
        %v590 = vcvt.f32.s32 %v589
        %v591 = vcvt.f32.s32 %v585
        %v592 = vshll.u32 %v591, 16
        %v593 = vadd.s32 %v592, %v590
        %vm594 = vcmp.eq.s32.totalorder %v452, %v578
        %vm595 = vcmp.eq.s32.totalorder %v452, %v593
        %v596 = vsel %vm594, inf, %v552
        %v597 = vsel %vm595, inf, %v553
        %v598 = vsel %vm465, %v596, inf
        %599 = vmin.xlane.f32.xlu0 %v598
        %v600 = vpop.xlane.xlu0 %599
        %v601 = vsel %vm465, %v597, inf
        %602 = vmin.xlane.f32.xlu0 %v601
        %v603 = vpop.xlane.xlu0 %602
        %vm604 = vcmp.eq.f32.partialorder %v596, %v600
        %vm605 = vcmp.eq.f32.partialorder %v597, %v603
        %v606 = vsel %vm604, %v452, 64
        %v607 = vsel %vm605, %v452, 64
        %v608 = vsel %vm465, %v606, 2147483647
        %v609 = vand.u32 %v608, 65535
        %v610 = vshra.s32 %v608, 16
        %v611 = vcvt.s32.f32 %v609
        %v612 = vcvt.s32.f32 %v610
        %613 = vmin.xlane.f32.xlu0 %v612
        %v614 = vpop.xlane.xlu0 %613
        %vm615 = vcmp.eq.f32.partialorder %v612, %v614
        %v616 = vsel %vm615, %v611, inf
        %617 = vmin.xlane.f32.xlu0 %v616
        %v618 = vpop.xlane.xlu0 %617
        %v619 = vcvt.f32.s32 %v618
        %v620 = vcvt.f32.s32 %v614
        %v621 = vshll.u32 %v620, 16
        %v622 = vadd.s32 %v621, %v619
        %v623 = vsel %vm465, %v607, 2147483647
        %v624 = vand.u32 %v623, 65535
        %v625 = vshra.s32 %v623, 16
        %v626 = vcvt.s32.f32 %v624
        %v627 = vcvt.s32.f32 %v625
        %628 = vmin.xlane.f32.xlu0 %v627
        %v629 = vpop.xlane.xlu0 %628
        %vm630 = vcmp.eq.f32.partialorder %v627, %v629
        %v631 = vsel %vm630, %v626, inf
        %632 = vmin.xlane.f32.xlu0 %v631
        %v633 = vpop.xlane.xlu0 %632
        %v634 = vcvt.f32.s32 %v633
        %v635 = vcvt.f32.s32 %v629
        %v636 = vshll.u32 %v635, 16
        %v637 = vadd.s32 %v636, %v634
        %vm638 = vcmp.eq.s32.totalorder %v452, %v622
        %vm639 = vcmp.eq.s32.totalorder %v452, %v637
        %v640 = vsel %vm506, 1, 0
        %v641 = vsel %vm507, 1, 0
        %v642 = vcvt.s32.f32 %v640
        %v643 = vcvt.s32.f32 %v641
        %v644 = vsel %vm550, 1, 0
        %v645 = vsel %vm551, 1, 0
        %v646 = vcvt.s32.f32 %v644
        %v647 = vcvt.s32.f32 %v645
        %v648 = vsel %vm594, 1, 0
        %v649 = vsel %vm595, 1, 0
        %v650 = vcvt.s32.f32 %v648
        %v651 = vcvt.s32.f32 %v649
        %v652 = vsel %vm638, 1, 0
        %v653 = vsel %vm639, 1, 0
        %v654 = vcvt.s32.f32 %v652
        %v655 = vcvt.s32.f32 %v653
        %v657 = vsel %vm465, %v642, 0
        %v660 = vsel %vm465, %v643, 0
        %v663 = vsel %vm465, %v646, 0
        %v666 = vsel %vm465, %v647, 0
        %v669 = vsel %vm465, %v650, 0
        %v672 = vsel %vm465, %v651, 0
        %v675 = vsel %vm465, %v654, 0
        %v678 = vsel %vm465, %v655, 0
        %680 = vmatprep.subr.mxu0 0.0
        %681 = vmatpush1.msra.mxu0 %v351
        %682 = vmatprep.subr.mxu0 0.0
        %683 = vmatpush1.msra.mxu0 %v352
        %684 = vmatprep.subr.mxu0 0.0
        %685 = vmatpush1.msra.mxu0 %v353
        %686 = vmatprep.subr.mxu0 0.0
        %687 = vmatpush1.msra.mxu0 %v354
        %688 = vmatprep.subr.mxu0 0.0
        %689 = vmatpush1.msra.mxu0 %v355
        %690 = vmatprep.subr.mxu0 0.0
        %691 = vmatpush1.msra.mxu0 %v356
        %692 = vmatprep.subr.mxu0 0.0
        %693 = vmatpush1.msra.mxu0 %v357
        %694 = vmatprep.subr.mxu0 0.0
        %695 = vmatpush1.msra.mxu0 %v358
        %696 = vmatprep.subr.mxu0 0.0
        %697 = vmatpush1.msra.mxu0 0.0
        %698 = vmatprep.subr.mxu0 0.0
        %699 = vmatpush1.msra.mxu0 0.0
        %700 = vmatprep.subr.mxu0 0.0
        %701 = vmatpush1.msra.mxu0 0.0
        %702 = vmatprep.subr.mxu0 0.0
        %703 = vmatpush1.msra.mxu0 0.0
        %704 = vmatprep.subr.mxu0 0.0
        %705 = vmatpush1.msra.mxu0 0.0
        %706 = vmatprep.subr.mxu0 0.0
        %707 = vmatpush1.msra.mxu0 0.0
        %708 = vmatprep.subr.mxu0 0.0
        %709 = vmatpush1.msra.mxu0 0.0
        %710 = vmatprep.subr.mxu0 0.0
        %711 = vmatpush1.msra.mxu0 0.0
        %712 = vmatprep.subr.mxu0 0.0
        %713 = vmatpush1.msra.mxu0 0.0
        %714 = vmatprep.subr.mxu0 0.0
        %715 = vmatpush1.msra.mxu0 0.0
        %716 = vmatprep.subr.mxu0 0.0
        %717 = vmatpush1.msra.mxu0 0.0
        %718 = vmatprep.subr.mxu0 0.0
        %719 = vmatpush1.msra.mxu0 0.0
        %720 = vmatprep.subr.mxu0 0.0
        %721 = vmatpush1.msra.mxu0 0.0
        %722 = vmatprep.subr.mxu0 0.0
        %723 = vmatpush1.msra.mxu0 0.0
        %724 = vmatprep.subr.mxu0 0.0
        %725 = vmatpush1.msra.mxu0 0.0
        %726 = vmatprep.subr.mxu0 0.0
        %727 = vmatpush1.msra.mxu0 0.0
        %728 = vmatprep.subr.mxu0 0.0
        %729 = vmatpush1.msra.mxu0 0.0
        %730 = vmatprep.subr.mxu0 0.0
        %731 = vmatpush1.msra.mxu0 0.0
        %732 = vmatprep.subr.mxu0 0.0
        %733 = vmatpush1.msra.mxu0 0.0
        %734 = vmatprep.subr.mxu0 0.0
        %735 = vmatpush1.msra.mxu0 0.0
        %736 = vmatprep.subr.mxu0 0.0
        %737 = vmatpush1.msra.mxu0 0.0
        %738 = vmatprep.subr.mxu0 0.0
        %739 = vmatpush1.msra.mxu0 0.0
        %740 = vmatprep.subr.mxu0 0.0
        %741 = vmatpush1.msra.mxu0 0.0
        %742 = vmatprep.subr.mxu0 0.0
        %743 = vmatpush1.msra.mxu0 0.0
        %744 = vmatprep.mubr.f32.mxu0 0.0
        %745 = vmatmul.mubr.f32.gmra.mrb[0].mxu0 %v657
        %v746 = vpop.f32.mrb[0].mxu0
        %v747 = vadd.f32 0.0, %v746
        %v748 = vpop.f32.mrb[0].mxu0
        %749 = vmatprep.mubr.f32.mxu0 0.0
        %750 = vmatmul.mubr.f32.gmra.mrb[0].mxu0 %v660
        %v751 = vpop.f32.mrb[0].mxu0
        %v752 = vadd.f32 0.0, %v751
        %v753 = vpop.f32.mrb[0].mxu0
        %754 = vmatprep.mubr.f32.mxu0 0.0
        %755 = vmatmul.mubr.f32.gmra.mrb[0].mxu0 %v663
        %v756 = vpop.f32.mrb[0].mxu0
        %v757 = vadd.f32 0.0, %v756
        %v758 = vpop.f32.mrb[0].mxu0
        %759 = vmatprep.mubr.f32.mxu0 0.0
        %760 = vmatmul.mubr.f32.gmra.mrb[0].mxu0 %v666
        %v761 = vpop.f32.mrb[0].mxu0
        %v762 = vadd.f32 0.0, %v761
        %v763 = vpop.f32.mrb[0].mxu0
        %764 = vmatprep.mubr.f32.mxu0 0.0
        %765 = vmatmul.mubr.f32.gmra.mrb[0].mxu0 %v669
        %v766 = vpop.f32.mrb[0].mxu0
        %v767 = vadd.f32 0.0, %v766
        %v768 = vpop.f32.mrb[0].mxu0
        %769 = vmatprep.mubr.f32.mxu0 0.0
        %770 = vmatmul.mubr.f32.gmra.mrb[0].mxu0 %v672
        %v771 = vpop.f32.mrb[0].mxu0
        %v772 = vadd.f32 0.0, %v771
        %v773 = vpop.f32.mrb[0].mxu0
        %774 = vmatprep.mubr.f32.mxu0 0.0
        %775 = vmatmul.mubr.f32.gmra.mrb[0].mxu0 %v675
        %v776 = vpop.f32.mrb[0].mxu0
        %v777 = vadd.f32 0.0, %v776
        %v778 = vpop.f32.mrb[0].mxu0
        %779 = vmatprep.mubr.f32.mxu0 0.0
        %780 = vmatmul.mubr.f32.gmra.mrb[0].mxu0 %v678
        %v781 = vpop.f32.mrb[0].mxu0
        %v782 = vadd.f32 0.0, %v781
        %v783 = vpop.f32.mrb[0].mxu0
        %784 = vdwg.mxu0
        %v785 = vmax.f32 %v747, %v767
        %v786 = vmax.f32 %v757, %v777
        %v787 = vmax.f32 %v785, %v786
        %v788 = vmax.f32 %v752, %v772
        %v789 = vmax.f32 %v762, %v782
        %v790 = vmax.f32 %v788, %v789
        %791 = vst [vmem:[%s322] sm:$0xff] %v787
        %792 = vst [vmem:[%s322 + $0x8] sm:$0xff] %v790
        %s793 = sand.u32 %s176, 1
        %s794 = scalar_lea.sflag [#allocation4], %s793
        %s795 = sand.u32 %s176, 1
        %s796 = smul.addr %s795, 16
        %s797 = scalar_lea.vmem [#allocation5], %s796
        // Predicated region
        $region45: #{tpu_custom_call.1} parent=39 // pred_check
          %p798 = pneg %p186
        $region46: #{tpu_custom_call.1} parent=39 // pred_check_branch
          %800 = sbr.rel (%p798) target = $region48
        $region47: #{tpu_custom_call.1} parent=39 // pred_region
          %s801 = smul.u32 2, %s27
          %s803 = ssub.s32 256, 256
          %804 = vsyncadd %s794, %s803
          %s805 = smul.addr %s26, 2
          %s806 = sadd.s32 %s801, %s805
          %s807 = smul.addr %s806, 128
          %s808 = scalar_lea.hbm %s5, %s807
          %s809 = sshll.u32 %s797, 4
          %s810 = int_to_ptr.vmem [resolvable:$true] %s809
          %815 = dma.vmem_to_hbm [thread:$0]  %s810, 256, %s808, %s794, 128, 128, 8
        $region48: #{tpu_custom_call.1} parent=39 // pred_fallthru
          _
      $region40: #{tpu_custom_call.1} parent=5 // pred_fallthru
        _
      %p816 = scmp.le.s32.totalorder 2, %s17
      // Predicated region
      $region49: #{tpu_custom_call.1} parent=5 // pred_check
        %p817 = pneg %p816
      $region50: #{tpu_custom_call.1} parent=5 // pred_check_branch
        %819 = sbr.rel (%p817) target = $region52
      $region51: #{tpu_custom_call.1} parent=5 // pred_region
        %s820 = ssub.s32 %s17, 2
        // Predicated region
        $region53: #{tpu_custom_call.1} parent=51 // pred_check
          %p821 = pneg %p192
        $region54: #{tpu_custom_call.1} parent=51 // pred_check_branch
          %823 = sbr.rel (%p821) target = $region56
        $region55: #{tpu_custom_call.1} parent=51 // pred_region
          %s824 = sand.u32 %s177, 1
          %s825 = scalar_lea.sflag [#allocation4], %s824
          %s826 = sand.u32 %s177, 1
          %s827 = smul.addr %s826, 16
          %s828 = scalar_lea.vmem [#allocation5], %s827
          %829 = dma.done %s825, 256
        $region56: #{tpu_custom_call.1} parent=51 // pred_fallthru
          _
      $region52: #{tpu_custom_call.1} parent=5 // pred_fallthru
        _
    $region6: #{tpu_custom_call.1} parent=1 // loop_footer
      %s21 = sadd.s32 1, %s17
    $region7: #{tpu_custom_call.1} parent=1 // loop_footer_branch
      %16 = sbr.rel target = $region3
    $region8: #{tpu_custom_call.1} parent=1 // loop_exit
      _
    %830 = vsyncpa [#allocation3], 1
    %s831 = scalar_lea.sflag [#allocation3], 1
    %832 = vsyncpa %s831, 1
    %833 = vsyncpa [#allocation4], 1
    %s834 = scalar_lea.sflag [#allocation4], 1
    %835 = vsyncpa %s834, 1

</llo_original>
